<compile_context>
chip_gen: v7x
topology: tpu7x:2x2x1
jax: 0.10.0
libtpu: 0.0.40
codegen_flags: <defaults>
</compile_context>

<pallas_src>
import functools
import math

import jax
import jax.numpy as jnp
from jax.experimental import pallas as pl
from jax.experimental.pallas import tpu as pltpu

EPS = 1e-5
LANE = 128
SUBLANE = 8


def _round_up(n, m):
    return ((n + m - 1) // m) * m


# ----------------------------- fused kernel ---------------------------------


def _fused_mlp_kernel(depth, width, x_ref, w0_ref, wh_ref, wo_ref, vec_ref,
                      bo_ref, o_ref):
    """One batch tile through all layers; activations never leave VMEM/vregs.

    x_ref   : (tile_m, Fp)  f32     input tile
    w0_ref  : (Fp, Wp)      bf16    first Linear weight
    wh_ref  : (max(depth-1,1), Wp, Wp) bf16  stacked hidden Linear weights
    wo_ref  : (Wp, Op)      bf16    classifier weight
    vec_ref : (3*depth, Wp) f32     rows [0..d) bias, [d..2d) gamma, [2d..3d) beta
    bo_ref  : (1, Op)       f32     classifier bias
    """
    Wp = w0_ref.shape[1]
    inv_w = 1.0 / float(width)                       # normalize over REAL width

    # Lane mask over the real feature width (hoisted out of the layer loop).
    lane = jax.lax.broadcasted_iota(jnp.int32, (1, Wp), 1)
    real = lane < width                              # (1, Wp) bool

    vec = vec_ref[...]                               # (3*depth, Wp) f32, tiny
    h = x_ref[...].astype(jnp.bfloat16)              # MXU operand dtype

    for l in range(depth):                           # static unroll (depth=4)
        w = w0_ref[...] if l == 0 else wh_ref[l - 1]
        # Linear (+ bias). Padded weight cols / bias lanes are zero, so padded
        # lanes of y are exactly 0 after ReLU.
        y = jnp.dot(h, w, preferred_element_type=jnp.float32) + vec[l:l + 1, :]
        y = jnp.maximum(y, 0.0)                      # ext.Activation (ReLU)
        # ext.Norm (LayerNorm), two-pass stats over the real width; the lane
        # mask keeps padded lanes out of the variance exactly.
        mean = jnp.sum(y, axis=-1, keepdims=True) * inv_w
        c = jnp.where(real, y - mean, 0.0)
        var = jnp.sum(c * c, axis=-1, keepdims=True) * inv_w
        # Padded gamma/beta lanes are zero -> padded lanes of h stay zero.
        hn = (c * jax.lax.rsqrt(var + EPS) * vec[depth + l:depth + l + 1, :]
              + vec[2 * depth + l:2 * depth + l + 1, :])
        h = hn.astype(jnp.bfloat16)                  # next MXU operand

    out = jnp.dot(h, wo_ref[...], preferred_element_type=jnp.float32) + bo_ref[...]
    o_ref[...] = out.astype(o_ref.dtype)


# ----------------------------- wrapper ---------------------------------------


@functools.partial(jax.jit, static_argnames=("depth", "width", "output_size"))
def prenorm_mlp_forward(x_nchw, packed, *, depth, width, output_size):
    B = x_nchw.shape[0]
    x = x_nchw.reshape(B, -1).astype(jnp.float32)    # ext.View(input_size)
    F = x.shape[1]

    w0, wh, wo = packed["w0"], packed["wh"], packed["wo"]
    vec, bo = packed["vec"], packed["bo"]
    Fp, Wp = w0.shape
    Op = wo.shape[1]

    # Batch tiling: aim for >= 2 grid steps (v7x TC sharding) with at most
    # tile_m-1 rows of padding; tile_m capped at 512 (activation tile stays
    # tiny next to VMEM limits).
    tile_m = min(512, _round_up(max((B + 1) // 2, 1), SUBLANE))
    Bp = _round_up(B, tile_m)
    grid = (Bp // tile_m,)

    # jit fuses this pad with the producer; no separate HBM round trip.
    xp = jnp.pad(x, ((0, Bp - B), (0, Fp - F)))

    flops = 2 * Bp * (Fp * Wp + max(depth - 1, 0) * Wp * Wp + Wp * Op)
    bytes_accessed = (Bp * Fp * 4 + w0.size * 2 + wh.size * 2 + wo.size * 2
                      + vec.size * 4 + bo.size * 4 + Bp * Op * 4)
    cost = pl.CostEstimate(flops=flops, transcendentals=depth * Bp,
                           bytes_accessed=bytes_accessed)

    kernel = functools.partial(_fused_mlp_kernel, depth, width)
    out_p = pl.pallas_call(
        kernel,
        out_shape=jax.ShapeDtypeStruct((Bp, Op), jnp.float32),
        grid=grid,
        in_specs=[
            # Activations: tiled over the batch (sublane-aligned, lane-dense).
            pl.BlockSpec((tile_m, Fp), lambda m: (m, 0)),
            # Parameters: full-array blocks, constant index map -> resident.
            pl.BlockSpec(w0.shape, lambda m: (0, 0)),
            pl.BlockSpec(wh.shape, lambda m: (0, 0, 0)),
            pl.BlockSpec(wo.shape, lambda m: (0, 0)),
            pl.BlockSpec(vec.shape, lambda m: (0, 0)),
            pl.BlockSpec(bo.shape, lambda m: (0, 0)),
        ],
        out_specs=pl.BlockSpec((tile_m, Op), lambda m: (m, 0)),
        compiler_params=pltpu.CompilerParams(
            dimension_semantics=("parallel",),       # batch tiles are independent
            vmem_limit_bytes=48 * 1024 * 1024,       # safe on v7x's 64 MiB
        ),
        cost_estimate=cost,
    )(xp, w0, wh, wo, vec, bo)
    return out_p[:B, :output_size]


# ----------------------------- params ----------------------------------------


def init_prenorm_mlp(key, depth=4, width=32, input_size=64, output_size=10):
    """Deterministic parameter init, mirroring torch.nn.Linear defaults."""
    def linear_params(k, fan_in, fan_out):
        kw, kb = jax.random.split(k)
        bound = 1.0 / math.sqrt(fan_in)
        w = jax.random.uniform(kw, (fan_in, fan_out), jnp.float32, -bound, bound)
        b = jax.random.uniform(kb, (1, fan_out), jnp.float32, -bound, bound)
        return w, b

    params = {"hidden": [], "out": None}
    keys = jax.random.split(key, depth + 1)
    fan_in = input_size
    for i in range(depth):
        w, b = linear_params(keys[i], fan_in, width)
        gamma = jnp.ones((1, width), jnp.float32)    # Norm affine init
        beta = jnp.zeros((1, width), jnp.float32)
        params["hidden"].append((w, b, gamma, beta))
        fan_in = width
    params["out"] = linear_params(keys[depth], width, output_size)
    return params


def pack_params(params, input_size, width, output_size):
    """Zero-pad feature axes to multiples of 128, cast weights to bf16, and
    stack the parameters into a handful of arrays (done ONCE, outside jit)."""
    Fp = max(_round_up(input_size, LANE), LANE)
    Wp = max(_round_up(width, LANE), LANE)
    Op = max(_round_up(output_size, LANE), LANE)
    depth = len(params["hidden"])

    def pad2(a, rows, cols, dtype):
        out = jnp.zeros((rows, cols), dtype)
        return out.at[:a.shape[0], :a.shape[1]].set(a.astype(dtype))

    w_list, b_rows, g_rows, bt_rows = [], [], [], []
    fan_in_p = Fp
    for (w, b, g, beta) in params["hidden"]:
        w_list.append(pad2(w, fan_in_p, Wp, jnp.bfloat16))
        b_rows.append(pad2(b, 1, Wp, jnp.float32))
        g_rows.append(pad2(g, 1, Wp, jnp.float32))
        bt_rows.append(pad2(beta, 1, Wp, jnp.float32))
        fan_in_p = Wp

    w0 = w_list[0]
    if depth > 1:
        wh = jnp.stack(w_list[1:], axis=0)           # (depth-1, Wp, Wp) bf16
    else:
        wh = jnp.zeros((1, Wp, Wp), jnp.bfloat16)    # unused placeholder
    vec = jnp.concatenate(b_rows + g_rows + bt_rows, axis=0)  # (3*depth, Wp) f32

    wo, bo = params["out"]
    return {"w0": w0, "wh": wh, "wo": pad2(wo, Wp, Op, jnp.bfloat16),
            "vec": vec, "bo": pad2(bo, 1, Op, jnp.float32)}


# ----------------------------- reference --------------------------------------


def prenorm_mlp_reference(x_nchw, params, mxu_dtype=jnp.float32):
    """Pure-JAX reference (unpadded). mxu_dtype=bf16 reproduces the kernel's
    intentional matmul-operand precision; f32 is the 'true' module numerics."""
    B = x_nchw.shape[0]
    h = x_nchw.reshape(B, -1).astype(jnp.float32)
    for (w, b, g, beta) in params["hidden"]:
        y = jnp.dot(h.astype(mxu_dtype), w.astype(mxu_dtype),
                    preferred_element_type=jnp.float32) + b
        y = jnp.maximum(y, 0.0)
        mean = jnp.mean(y, axis=-1, keepdims=True)
        c = y - mean
        var = jnp.mean(c * c, axis=-1, keepdims=True)
        h = c * jax.lax.rsqrt(var + EPS) * g + beta
    wo, bo = params["out"]
    return jnp.dot(h.astype(mxu_dtype), wo.astype(mxu_dtype),
                   preferred_element_type=jnp.float32) + bo


# ----------------------------- main -------------------------------------------


if __name__ == "__main__":
    key = jax.random.PRNGKey(0)
    k_x, k_p = jax.random.split(key)

    # Small, module-consistent shapes: batch=16 (gives a 2-step parallel grid),
    # NCHW input (16, 1, 8, 8) -> input_size = 64, width = 32, depth = 4,
    # output_size = 10.
    B, C, H, W = 16, 1, 8, 8
    depth, width, output_size = 4, 32, 10
    input_size = C * H * W

    x = jax.random.normal(k_x, (B, C, H, W), dtype=jnp.float32)
    params = init_prenorm_mlp(k_p, depth=depth, width=width,
                              input_size=input_size, output_size=output_size)
    packed = pack_params(params, input_size, width, output_size)

    out = prenorm_mlp_forward(x, packed, depth=depth, width=width,
                              output_size=output_size)
    out = jax.block_until_ready(out)
    assert out.shape == (B, output_size), out.shape

    # Tight check against a reference with matching (bf16-operand) numerics.
    ref_bf16 = prenorm_mlp_reference(x, params, mxu_dtype=jnp.bfloat16)
    assert jnp.allclose(out, ref_bf16, atol=5e-4, rtol=5e-4), \
        "mismatch vs matched-precision JAX reference"
    # Loose sanity check against the full-f32 module semantics (bf16 MXU
    # operands are an intentional precision trade-off).
    ref_f32 = prenorm_mlp_reference(x, params, mxu_dtype=jnp.float32)
    assert jnp.allclose(out, ref_f32, atol=2e-1, rtol=0.0), \
        "gross mismatch vs f32 JAX reference"

    print("KERNEL_OK")
</pallas_src>

<mosaic_0001>
module attributes {stable_mosaic.version = 11 : i64} {
  func.func @_fused_mlp_kernel(%arg0: i32, %arg1: memref<8x128xf32, #tpu.memory_space<vmem>>, %arg2: memref<128x128xbf16, #tpu.memory_space<vmem>>, %arg3: memref<3x128x128xbf16, #tpu.memory_space<vmem>>, %arg4: memref<128x128xbf16, #tpu.memory_space<vmem>>, %arg5: memref<12x128xf32, #tpu.memory_space<vmem>>, %arg6: memref<1x128xf32, #tpu.memory_space<vmem>>, %arg7: memref<8x128xf32, #tpu.memory_space<vmem>>) attributes {dimension_semantics = [#tpu.dimension_semantics<parallel>], iteration_bounds = array<i64: 2>, scalar_prefetch = 0 : i64, scratch_operands = 0 : i64, tpu.core_type = #tpu.core_type<tc>, window_params = [{transform_indices = @transform_0, window_bounds = array<i64: 8, 128>}, {pipeline_mode = #tpu.pipeline_mode<synchronous>, transform_indices = @transform_1, window_bounds = array<i64: 128, 128>}, {pipeline_mode = #tpu.pipeline_mode<synchronous>, transform_indices = @transform_2, window_bounds = array<i64: 3, 128, 128>}, {pipeline_mode = #tpu.pipeline_mode<synchronous>, transform_indices = @transform_3, window_bounds = array<i64: 128, 128>}, {pipeline_mode = #tpu.pipeline_mode<synchronous>, transform_indices = @transform_4, window_bounds = array<i64: 12, 128>}, {pipeline_mode = #tpu.pipeline_mode<synchronous>, transform_indices = @transform_5, window_bounds = array<i64: 1, 128>}, {transform_indices = @transform_6, window_bounds = array<i64: 8, 128>}]} {
    %0 = tpu.iota {dimensions = array<i32: 1>} : vector<1x128xi32>
    %c32_i32 = arith.constant 32 : i32
    %1 = vector.broadcast %c32_i32 : i32 to vector<1x128xi32>
    %2 = arith.cmpi slt, %0, %1 : vector<1x128xi32>
    %c0 = arith.constant 0 : index
    %c0_0 = arith.constant 0 : index
    %3 = vector.load %arg5[%c0, %c0_0] : memref<12x128xf32, #tpu.memory_space<vmem>>, vector<12x128xf32>
    %c0_1 = arith.constant 0 : index
    %c0_2 = arith.constant 0 : index
    %4 = vector.load %arg1[%c0_1, %c0_2] : memref<8x128xf32, #tpu.memory_space<vmem>>, vector<8x128xf32>
    %5 = arith.truncf %4 : vector<8x128xf32> to vector<8x128xbf16>
    %c0_3 = arith.constant 0 : index
    %c0_4 = arith.constant 0 : index
    %6 = vector.load %arg2[%c0_3, %c0_4] : memref<128x128xbf16, #tpu.memory_space<vmem>>, vector<128x128xbf16>
    %cst = arith.constant dense<0.000000e+00> : vector<8x128xf32>
    %7 = tpu.matmul %5, %6, %cst {dimension_numbers = #tpu.dot_dimension_numbers<[1], [0], [0], [1], [0, 0, 1, 1], [], []>} : vector<8x128xbf16>, vector<128x128xbf16>, vector<8x128xf32> -> vector<8x128xf32>
    %8 = vector.extract_strided_slice %3 {offsets = [0, 0], sizes = [1, 128], strides = [1, 1]} : vector<12x128xf32> to vector<1x128xf32>
    %9 = vector.broadcast %8 : vector<1x128xf32> to vector<8x128xf32>
    %10 = arith.addf %7, %9 : vector<8x128xf32>
    %cst_5 = arith.constant 0.000000e+00 : f32
    %11 = vector.broadcast %cst_5 : f32 to vector<8x128xf32>
    %12 = arith.maximumf %10, %11 : vector<8x128xf32>
    %cst_6 = arith.constant dense<0.000000e+00> : vector<8xf32>
    %13 = vector.multi_reduction <add>, %12, %cst_6 [1] : vector<8x128xf32> to vector<8xf32>
    %14 = vector.shape_cast %13 : vector<8xf32> to vector<8x1xf32>
    %cst_7 = arith.constant 3.125000e-02 : f32
    %15 = vector.broadcast %cst_7 : f32 to vector<8x1xf32>
    %16 = arith.mulf %14, %15 : vector<8x1xf32>
    %17 = vector.broadcast %16 : vector<8x1xf32> to vector<8x128xf32>
    %18 = arith.subf %12, %17 : vector<8x128xf32>
    %cst_8 = arith.constant 0.000000e+00 : f32
    %19 = vector.shape_cast %2 : vector<1x128xi1> to vector<1x128xi1>
    %20 = vector.broadcast %19 : vector<1x128xi1> to vector<8x128xi1>
    %21 = vector.broadcast %cst_8 : f32 to vector<8x128xf32>
    %22 = arith.select %20, %18, %21 : vector<8x128xi1>, vector<8x128xf32>
    %23 = arith.mulf %22, %22 : vector<8x128xf32>
    %cst_9 = arith.constant dense<0.000000e+00> : vector<8xf32>
    %24 = vector.multi_reduction <add>, %23, %cst_9 [1] : vector<8x128xf32> to vector<8xf32>
    %25 = vector.shape_cast %24 : vector<8xf32> to vector<8x1xf32>
    %cst_10 = arith.constant 3.125000e-02 : f32
    %26 = vector.broadcast %cst_10 : f32 to vector<8x1xf32>
    %27 = arith.mulf %25, %26 : vector<8x1xf32>
    %cst_11 = arith.constant 9.99999974E-6 : f32
    %28 = vector.broadcast %cst_11 : f32 to vector<8x1xf32>
    %29 = arith.addf %27, %28 : vector<8x1xf32>
    %30 = math.rsqrt %29 : vector<8x1xf32>
    %31 = vector.broadcast %30 : vector<8x1xf32> to vector<8x128xf32>
    %32 = arith.mulf %22, %31 : vector<8x128xf32>
    %33 = vector.extract_strided_slice %3 {offsets = [4, 0], sizes = [1, 128], strides = [1, 1]} : vector<12x128xf32> to vector<1x128xf32>
    %34 = vector.broadcast %33 : vector<1x128xf32> to vector<8x128xf32>
    %35 = arith.mulf %32, %34 : vector<8x128xf32>
    %36 = vector.extract_strided_slice %3 {offsets = [8, 0], sizes = [1, 128], strides = [1, 1]} : vector<12x128xf32> to vector<1x128xf32>
    %37 = vector.broadcast %36 : vector<1x128xf32> to vector<8x128xf32>
    %38 = arith.addf %35, %37 : vector<8x128xf32>
    %39 = arith.truncf %38 : vector<8x128xf32> to vector<8x128xbf16>
    %c0_12 = arith.constant 0 : index
    %c0_13 = arith.constant 0 : index
    %c0_14 = arith.constant 0 : index
    %40 = vector.load %arg3[%c0_12, %c0_13, %c0_14] : memref<3x128x128xbf16, #tpu.memory_space<vmem>>, vector<1x128x128xbf16>
    %41 = vector.shape_cast %40 : vector<1x128x128xbf16> to vector<128x128xbf16>
    %cst_15 = arith.constant dense<0.000000e+00> : vector<8x128xf32>
    %42 = tpu.matmul %39, %41, %cst_15 {dimension_numbers = #tpu.dot_dimension_numbers<[1], [0], [0], [1], [0, 0, 1, 1], [], []>} : vector<8x128xbf16>, vector<128x128xbf16>, vector<8x128xf32> -> vector<8x128xf32>
    %43 = vector.extract_strided_slice %3 {offsets = [1, 0], sizes = [1, 128], strides = [1, 1]} : vector<12x128xf32> to vector<1x128xf32>
    %44 = vector.broadcast %43 : vector<1x128xf32> to vector<8x128xf32>
    %45 = arith.addf %42, %44 : vector<8x128xf32>
    %cst_16 = arith.constant 0.000000e+00 : f32
    %46 = vector.broadcast %cst_16 : f32 to vector<8x128xf32>
    %47 = arith.maximumf %45, %46 : vector<8x128xf32>
    %cst_17 = arith.constant dense<0.000000e+00> : vector<8xf32>
    %48 = vector.multi_reduction <add>, %47, %cst_17 [1] : vector<8x128xf32> to vector<8xf32>
    %49 = vector.shape_cast %48 : vector<8xf32> to vector<8x1xf32>
    %cst_18 = arith.constant 3.125000e-02 : f32
    %50 = vector.broadcast %cst_18 : f32 to vector<8x1xf32>
    %51 = arith.mulf %49, %50 : vector<8x1xf32>
    %52 = vector.broadcast %51 : vector<8x1xf32> to vector<8x128xf32>
    %53 = arith.subf %47, %52 : vector<8x128xf32>
    %cst_19 = arith.constant 0.000000e+00 : f32
    %54 = vector.shape_cast %2 : vector<1x128xi1> to vector<1x128xi1>
    %55 = vector.broadcast %54 : vector<1x128xi1> to vector<8x128xi1>
    %56 = vector.broadcast %cst_19 : f32 to vector<8x128xf32>
    %57 = arith.select %55, %53, %56 : vector<8x128xi1>, vector<8x128xf32>
    %58 = arith.mulf %57, %57 : vector<8x128xf32>
    %cst_20 = arith.constant dense<0.000000e+00> : vector<8xf32>
    %59 = vector.multi_reduction <add>, %58, %cst_20 [1] : vector<8x128xf32> to vector<8xf32>
    %60 = vector.shape_cast %59 : vector<8xf32> to vector<8x1xf32>
    %cst_21 = arith.constant 3.125000e-02 : f32
    %61 = vector.broadcast %cst_21 : f32 to vector<8x1xf32>
    %62 = arith.mulf %60, %61 : vector<8x1xf32>
    %cst_22 = arith.constant 9.99999974E-6 : f32
    %63 = vector.broadcast %cst_22 : f32 to vector<8x1xf32>
    %64 = arith.addf %62, %63 : vector<8x1xf32>
    %65 = math.rsqrt %64 : vector<8x1xf32>
    %66 = vector.broadcast %65 : vector<8x1xf32> to vector<8x128xf32>
    %67 = arith.mulf %57, %66 : vector<8x128xf32>
    %68 = vector.extract_strided_slice %3 {offsets = [5, 0], sizes = [1, 128], strides = [1, 1]} : vector<12x128xf32> to vector<1x128xf32>
    %69 = vector.broadcast %68 : vector<1x128xf32> to vector<8x128xf32>
    %70 = arith.mulf %67, %69 : vector<8x128xf32>
    %71 = vector.extract_strided_slice %3 {offsets = [9, 0], sizes = [1, 128], strides = [1, 1]} : vector<12x128xf32> to vector<1x128xf32>
    %72 = vector.broadcast %71 : vector<1x128xf32> to vector<8x128xf32>
    %73 = arith.addf %70, %72 : vector<8x128xf32>
    %74 = arith.truncf %73 : vector<8x128xf32> to vector<8x128xbf16>
    %c1 = arith.constant 1 : index
    %c0_23 = arith.constant 0 : index
    %c0_24 = arith.constant 0 : index
    %75 = vector.load %arg3[%c1, %c0_23, %c0_24] : memref<3x128x128xbf16, #tpu.memory_space<vmem>>, vector<1x128x128xbf16>
    %76 = vector.shape_cast %75 : vector<1x128x128xbf16> to vector<128x128xbf16>
    %cst_25 = arith.constant dense<0.000000e+00> : vector<8x128xf32>
    %77 = tpu.matmul %74, %76, %cst_25 {dimension_numbers = #tpu.dot_dimension_numbers<[1], [0], [0], [1], [0, 0, 1, 1], [], []>} : vector<8x128xbf16>, vector<128x128xbf16>, vector<8x128xf32> -> vector<8x128xf32>
    %78 = vector.extract_strided_slice %3 {offsets = [2, 0], sizes = [1, 128], strides = [1, 1]} : vector<12x128xf32> to vector<1x128xf32>
    %79 = vector.broadcast %78 : vector<1x128xf32> to vector<8x128xf32>
    %80 = arith.addf %77, %79 : vector<8x128xf32>
    %cst_26 = arith.constant 0.000000e+00 : f32
    %81 = vector.broadcast %cst_26 : f32 to vector<8x128xf32>
    %82 = arith.maximumf %80, %81 : vector<8x128xf32>
    %cst_27 = arith.constant dense<0.000000e+00> : vector<8xf32>
    %83 = vector.multi_reduction <add>, %82, %cst_27 [1] : vector<8x128xf32> to vector<8xf32>
    %84 = vector.shape_cast %83 : vector<8xf32> to vector<8x1xf32>
    %cst_28 = arith.constant 3.125000e-02 : f32
    %85 = vector.broadcast %cst_28 : f32 to vector<8x1xf32>
    %86 = arith.mulf %84, %85 : vector<8x1xf32>
    %87 = vector.broadcast %86 : vector<8x1xf32> to vector<8x128xf32>
    %88 = arith.subf %82, %87 : vector<8x128xf32>
    %cst_29 = arith.constant 0.000000e+00 : f32
    %89 = vector.shape_cast %2 : vector<1x128xi1> to vector<1x128xi1>
    %90 = vector.broadcast %89 : vector<1x128xi1> to vector<8x128xi1>
    %91 = vector.broadcast %cst_29 : f32 to vector<8x128xf32>
    %92 = arith.select %90, %88, %91 : vector<8x128xi1>, vector<8x128xf32>
    %93 = arith.mulf %92, %92 : vector<8x128xf32>
    %cst_30 = arith.constant dense<0.000000e+00> : vector<8xf32>
    %94 = vector.multi_reduction <add>, %93, %cst_30 [1] : vector<8x128xf32> to vector<8xf32>
    %95 = vector.shape_cast %94 : vector<8xf32> to vector<8x1xf32>
    %cst_31 = arith.constant 3.125000e-02 : f32
    %96 = vector.broadcast %cst_31 : f32 to vector<8x1xf32>
    %97 = arith.mulf %95, %96 : vector<8x1xf32>
    %cst_32 = arith.constant 9.99999974E-6 : f32
    %98 = vector.broadcast %cst_32 : f32 to vector<8x1xf32>
    %99 = arith.addf %97, %98 : vector<8x1xf32>
    %100 = math.rsqrt %99 : vector<8x1xf32>
    %101 = vector.broadcast %100 : vector<8x1xf32> to vector<8x128xf32>
    %102 = arith.mulf %92, %101 : vector<8x128xf32>
    %103 = vector.extract_strided_slice %3 {offsets = [6, 0], sizes = [1, 128], strides = [1, 1]} : vector<12x128xf32> to vector<1x128xf32>
    %104 = vector.broadcast %103 : vector<1x128xf32> to vector<8x128xf32>
    %105 = arith.mulf %102, %104 : vector<8x128xf32>
    %106 = vector.extract_strided_slice %3 {offsets = [10, 0], sizes = [1, 128], strides = [1, 1]} : vector<12x128xf32> to vector<1x128xf32>
    %107 = vector.broadcast %106 : vector<1x128xf32> to vector<8x128xf32>
    %108 = arith.addf %105, %107 : vector<8x128xf32>
    %109 = arith.truncf %108 : vector<8x128xf32> to vector<8x128xbf16>
    %c2 = arith.constant 2 : index
    %c0_33 = arith.constant 0 : index
    %c0_34 = arith.constant 0 : index
    %110 = vector.load %arg3[%c2, %c0_33, %c0_34] : memref<3x128x128xbf16, #tpu.memory_space<vmem>>, vector<1x128x128xbf16>
    %111 = vector.shape_cast %110 : vector<1x128x128xbf16> to vector<128x128xbf16>
    %cst_35 = arith.constant dense<0.000000e+00> : vector<8x128xf32>
    %112 = tpu.matmul %109, %111, %cst_35 {dimension_numbers = #tpu.dot_dimension_numbers<[1], [0], [0], [1], [0, 0, 1, 1], [], []>} : vector<8x128xbf16>, vector<128x128xbf16>, vector<8x128xf32> -> vector<8x128xf32>
    %113 = vector.extract_strided_slice %3 {offsets = [3, 0], sizes = [1, 128], strides = [1, 1]} : vector<12x128xf32> to vector<1x128xf32>
    %114 = vector.broadcast %113 : vector<1x128xf32> to vector<8x128xf32>
    %115 = arith.addf %112, %114 : vector<8x128xf32>
    %cst_36 = arith.constant 0.000000e+00 : f32
    %116 = vector.broadcast %cst_36 : f32 to vector<8x128xf32>
    %117 = arith.maximumf %115, %116 : vector<8x128xf32>
    %cst_37 = arith.constant dense<0.000000e+00> : vector<8xf32>
    %118 = vector.multi_reduction <add>, %117, %cst_37 [1] : vector<8x128xf32> to vector<8xf32>
    %119 = vector.shape_cast %118 : vector<8xf32> to vector<8x1xf32>
    %cst_38 = arith.constant 3.125000e-02 : f32
    %120 = vector.broadcast %cst_38 : f32 to vector<8x1xf32>
    %121 = arith.mulf %119, %120 : vector<8x1xf32>
    %122 = vector.broadcast %121 : vector<8x1xf32> to vector<8x128xf32>
    %123 = arith.subf %117, %122 : vector<8x128xf32>
    %cst_39 = arith.constant 0.000000e+00 : f32
    %124 = vector.shape_cast %2 : vector<1x128xi1> to vector<1x128xi1>
    %125 = vector.broadcast %124 : vector<1x128xi1> to vector<8x128xi1>
    %126 = vector.broadcast %cst_39 : f32 to vector<8x128xf32>
    %127 = arith.select %125, %123, %126 : vector<8x128xi1>, vector<8x128xf32>
    %128 = arith.mulf %127, %127 : vector<8x128xf32>
    %cst_40 = arith.constant dense<0.000000e+00> : vector<8xf32>
    %129 = vector.multi_reduction <add>, %128, %cst_40 [1] : vector<8x128xf32> to vector<8xf32>
    %130 = vector.shape_cast %129 : vector<8xf32> to vector<8x1xf32>
    %cst_41 = arith.constant 3.125000e-02 : f32
    %131 = vector.broadcast %cst_41 : f32 to vector<8x1xf32>
    %132 = arith.mulf %130, %131 : vector<8x1xf32>
    %cst_42 = arith.constant 9.99999974E-6 : f32
    %133 = vector.broadcast %cst_42 : f32 to vector<8x1xf32>
    %134 = arith.addf %132, %133 : vector<8x1xf32>
    %135 = math.rsqrt %134 : vector<8x1xf32>
    %136 = vector.broadcast %135 : vector<8x1xf32> to vector<8x128xf32>
    %137 = arith.mulf %127, %136 : vector<8x128xf32>
    %138 = vector.extract_strided_slice %3 {offsets = [7, 0], sizes = [1, 128], strides = [1, 1]} : vector<12x128xf32> to vector<1x128xf32>
    %139 = vector.broadcast %138 : vector<1x128xf32> to vector<8x128xf32>
    %140 = arith.mulf %137, %139 : vector<8x128xf32>
    %141 = vector.extract_strided_slice %3 {offsets = [11, 0], sizes = [1, 128], strides = [1, 1]} : vector<12x128xf32> to vector<1x128xf32>
    %142 = vector.broadcast %141 : vector<1x128xf32> to vector<8x128xf32>
    %143 = arith.addf %140, %142 : vector<8x128xf32>
    %144 = arith.truncf %143 : vector<8x128xf32> to vector<8x128xbf16>
    %c0_43 = arith.constant 0 : index
    %c0_44 = arith.constant 0 : index
    %145 = vector.load %arg4[%c0_43, %c0_44] : memref<128x128xbf16, #tpu.memory_space<vmem>>, vector<128x128xbf16>
    %cst_45 = arith.constant dense<0.000000e+00> : vector<8x128xf32>
    %146 = tpu.matmul %144, %145, %cst_45 {dimension_numbers = #tpu.dot_dimension_numbers<[1], [0], [0], [1], [0, 0, 1, 1], [], []>} : vector<8x128xbf16>, vector<128x128xbf16>, vector<8x128xf32> -> vector<8x128xf32>
    %c0_46 = arith.constant 0 : index
    %c0_47 = arith.constant 0 : index
    %147 = vector.load %arg6[%c0_46, %c0_47] : memref<1x128xf32, #tpu.memory_space<vmem>>, vector<1x128xf32>
    %148 = vector.broadcast %147 : vector<1x128xf32> to vector<8x128xf32>
    %149 = arith.addf %146, %148 : vector<8x128xf32>
    %c0_48 = arith.constant 0 : index
    %c0_49 = arith.constant 0 : index
    %150 = vector.load %arg7[%c0_48, %c0_49] : memref<8x128xf32, #tpu.memory_space<vmem>>, vector<8x128xf32>
    tpu.vector_store %arg7[%c0_48, %c0_49], %149 {strides = array<i32>} : memref<8x128xf32, #tpu.memory_space<vmem>>, vector<8x128xf32>,
    return
  }
  func.func @transform_0(%arg0: i32) -> (i32, i32) {
    %c0_i32 = arith.constant 0 : i32
    %c0_i32_0 = arith.constant 0 : i32
    return %arg0, %c0_i32 : i32, i32
  }
  func.func @transform_1(%arg0: i32) -> (i32, i32) {
    %c0_i32 = arith.constant 0 : i32
    %c0_i32_0 = arith.constant 0 : i32
    %c0_i32_1 = arith.constant 0 : i32
    return %c0_i32, %c0_i32_0 : i32, i32
  }
  func.func @transform_2(%arg0: i32) -> (i32, i32, i32) {
    %c0_i32 = arith.constant 0 : i32
    %c0_i32_0 = arith.constant 0 : i32
    %c0_i32_1 = arith.constant 0 : i32
    %c0_i32_2 = arith.constant 0 : i32
    return %c0_i32, %c0_i32_0, %c0_i32_1 : i32, i32, i32
  }
  func.func @transform_3(%arg0: i32) -> (i32, i32) {
    %c0_i32 = arith.constant 0 : i32
    %c0_i32_0 = arith.constant 0 : i32
    %c0_i32_1 = arith.constant 0 : i32
    return %c0_i32, %c0_i32_0 : i32, i32
  }
  func.func @transform_4(%arg0: i32) -> (i32, i32) {
    %c0_i32 = arith.constant 0 : i32
    %c0_i32_0 = arith.constant 0 : i32
    %c0_i32_1 = arith.constant 0 : i32
    return %c0_i32, %c0_i32_0 : i32, i32
  }
  func.func @transform_5(%arg0: i32) -> (i32, i32) {
    %c0_i32 = arith.constant 0 : i32
    %c0_i32_0 = arith.constant 0 : i32
    %c0_i32_1 = arith.constant 0 : i32
    return %c0_i32, %c0_i32_0 : i32, i32
  }
  func.func @transform_6(%arg0: i32) -> (i32, i32) {
    %c0_i32 = arith.constant 0 : i32
    %c0_i32_0 = arith.constant 0 : i32
    return %arg0, %c0_i32 : i32, i32
  }
}

</mosaic_0001>

<llo_original>
// kernel: prenorm_mlp_forward.1
$region0: #{prenorm_mlp_forward.1}
  #allocation0 [shape = 'u32[]', space=smem, size = 0x4, offset = 0x4, fixed_abs, tag = 'smem constant byte address 0x4 - core index']
  #allocation1 [shape = 'u32[144,128]{1,0:T(1,128)}', space=vmem, size = 0x12000, scoped, tag = 'internal scratch']
  %s0 = inlined_call_operand.vmem [shape: f32[16,128], index: 0, kind: input, shape index: {}]
  %s1 = inlined_call_operand.vmem [shape: bf16[128,128], index: 1, kind: input, shape index: {}]
  %s2 = inlined_call_operand.hbm [shape: bf16[3,128,128], index: 2, kind: input, shape index: {}]
  %s3 = inlined_call_operand.vmem [shape: bf16[128,128], index: 3, kind: input, shape index: {}]
  %s4 = inlined_call_operand.hbm [shape: f32[12,128], index: 4, kind: input, shape index: {}]
  %s5 = inlined_call_operand.hbm [shape: f32[1,128], index: 5, kind: input, shape index: {}]
  %s6 = inlined_call_operand.hbm [shape: f32[16,128], index: 6, kind: output, shape index: {}]
  %s7 = sld [smem:[#allocation0]]
  $region69: #{prenorm_mlp_forward.1} parent=0
    _
  %s9 = ssub.s32 1, %s7
  %s10 = scalar_select 0, %s9, %s7
  $region1: #{prenorm_mlp_forward.1} parent=0
    #allocation2 [shape = 'u8[98304]{0}', space=vmem, size = 0x18000, scoped, tag = 'input window, operand 2, single buffered']
    #allocation3 [shape = 's32[2]{0}', space=sflag, size = 0x8, scoped, tag = 'scoped memory for prenorm_mlp_forward.1']
    #allocation4 [shape = 's32[2]{0}', space=sflag, size = 0x8, scoped, tag = 'scoped memory for prenorm_mlp_forward.1']
    #allocation5 [shape = 'u8[8192]{0}', space=vmem, size = 0x2000, scoped, tag = 'input window, operand 4, single buffered']
    #allocation6 [shape = 's32[1]{0}', space=sflag, size = 0x4, scoped, tag = 'scoped memory for prenorm_mlp_forward.1']
    #allocation7 [shape = 'u8[512]{0}', space=vmem, size = 0x400, scoped, tag = 'input window, operand 5, single buffered']
    #allocation8 [shape = 'u8[8192]{0}', space=vmem, size = 0x2000, scoped, tag = 'output window, operand 0']
    %11 = vsyncpa [#allocation3], 0
    %12 = vsyncpa [#allocation6], 0
    %13 = vsyncpa [#allocation4], 0
    %s14 = scalar_lea.sflag [#allocation4], 1
    %15 = vsyncpa %s14, 0
    loop: start=0, step=1, limit=4
    $region2: #{prenorm_mlp_forward.1} parent=1 // loop_pre_header
      _
    $region3: #{prenorm_mlp_forward.1} parent=1 // loop_header
      %s17 = sphi 0, %s21
      %p18 = scmp.ge.s32.totalorder %s17, 4
      %s27 = sphi 0, %s29
      %s30 = sphi 0, %s27
      %s31 = sphi 0, %s30
      %s47 = sphi 0, %s31
      %s51 = sphi 0, %s51
      %s53 = sphi 0, %s51
      %s54 = sphi 0, %s53
      %s68 = sphi 0, %s54
      %s72 = sphi 0, %s72
      %s74 = sphi 0, %s72
      %s75 = sphi 0, %s74
      %s89 = sphi 0, %s75
      %s93 = sphi 0, %s93
      %s95 = sphi 0, %s93
      %s96 = sphi 0, %s95
      %s110 = sphi 0, %s96
      %s114 = sphi 0, %s114
      %s116 = sphi 0, %s114
      %s117 = sphi 0, %s116
      %s131 = sphi 0, %s117
      %s135 = sphi 0, %s135
      %s137 = sphi 0, %s135
      %s138 = sphi 0, %s137
      %s152 = sphi 0, %s138
      %s158 = sphi 0, %s160
      %s161 = sphi 0, %s158
      %s162 = sphi 0, %s161
      %s178 = sphi 0, %s162
    $region4: #{prenorm_mlp_forward.1} parent=1 // loop_header_branch
      %20 = sbr.rel (%p18) target = $region8
    $region5: #{prenorm_mlp_forward.1} parent=1 // loop_body
      %s22 = ssub.s32 %s17, 1
      %s23 = ssub.s32 %s17, 2
      %s24 = sadd.s32 %s17, 1
      %s25 = ssub.s32 %s17, %s24
      %p26 = scmp.eq.s32.totalorder %s25, 0
      %s28 = sadd.s32 %s27, 1
      %s29 = scalar_select %p26, %s27, %s28
      %p32 = pneg %p26
      %p33 = scmp.eq.s32.totalorder %s17, 1
      %p34 = por %p32, %p33
      %p35 = scmp.ne.s32.totalorder %s27, %s30
      %p36 = scmp.eq.s32.totalorder %s17, 0
      %p37 = por %p35, %p36
      %p38 = scmp.ne.s32.totalorder %s27, %s30
      %p39 = scmp.eq.s32.totalorder %s22, 1
      %p40 = por %p38, %p39
      %p41 = scmp.ne.s32.totalorder %s30, %s31
      %p42 = scmp.eq.s32.totalorder %s22, 0
      %p43 = por %p41, %p42
      %p44 = scmp.ne.s32.totalorder %s30, %s31
      %p45 = scmp.eq.s32.totalorder %s23, 1
      %p46 = por %p44, %p45
      %p48 = scmp.ne.s32.totalorder %s31, %s47
      %p49 = scmp.eq.s32.totalorder %s23, 0
      %p50 = por %p48, %p49
      %s52 = sadd.s32 %s51, 1
      %p55 = scmp.eq.s32.totalorder %s17, 1
      %p56 = scmp.ne.s32.totalorder %s51, %s53
      %p57 = scmp.eq.s32.totalorder %s17, 0
      %p58 = por %p56, %p57
      %p59 = scmp.ne.s32.totalorder %s51, %s53
      %p60 = scmp.eq.s32.totalorder %s22, 1
      %p61 = por %p59, %p60
      %p62 = scmp.ne.s32.totalorder %s53, %s54
      %p63 = scmp.eq.s32.totalorder %s22, 0
      %p64 = por %p62, %p63
      %p65 = scmp.ne.s32.totalorder %s53, %s54
      %p66 = scmp.eq.s32.totalorder %s23, 1
      %p67 = por %p65, %p66
      %p69 = scmp.ne.s32.totalorder %s54, %s68
      %p70 = scmp.eq.s32.totalorder %s23, 0
      %p71 = por %p69, %p70
      %s73 = sadd.s32 %s72, 1
      %p76 = scmp.eq.s32.totalorder %s17, 1
      %p77 = scmp.ne.s32.totalorder %s72, %s74
      %p78 = scmp.eq.s32.totalorder %s17, 0
      %p79 = por %p77, %p78
      %p80 = scmp.ne.s32.totalorder %s72, %s74
      %p81 = scmp.eq.s32.totalorder %s22, 1
      %p82 = por %p80, %p81
      %p83 = scmp.ne.s32.totalorder %s74, %s75
      %p84 = scmp.eq.s32.totalorder %s22, 0
      %p85 = por %p83, %p84
      %p86 = scmp.ne.s32.totalorder %s74, %s75
      %p87 = scmp.eq.s32.totalorder %s23, 1
      %p88 = por %p86, %p87
      %p90 = scmp.ne.s32.totalorder %s75, %s89
      %p91 = scmp.eq.s32.totalorder %s23, 0
      %p92 = por %p90, %p91
      %s94 = sadd.s32 %s93, 1
      %p97 = scmp.eq.s32.totalorder %s17, 1
      %p98 = scmp.ne.s32.totalorder %s93, %s95
      %p99 = scmp.eq.s32.totalorder %s17, 0
      %p100 = por %p98, %p99
      %p101 = scmp.ne.s32.totalorder %s93, %s95
      %p102 = scmp.eq.s32.totalorder %s22, 1
      %p103 = por %p101, %p102
      %p104 = scmp.ne.s32.totalorder %s95, %s96
      %p105 = scmp.eq.s32.totalorder %s22, 0
      %p106 = por %p104, %p105
      %p107 = scmp.ne.s32.totalorder %s95, %s96
      %p108 = scmp.eq.s32.totalorder %s23, 1
      %p109 = por %p107, %p108
      %p111 = scmp.ne.s32.totalorder %s96, %s110
      %p112 = scmp.eq.s32.totalorder %s23, 0
      %p113 = por %p111, %p112
      %s115 = sadd.s32 %s114, 1
      %p118 = scmp.eq.s32.totalorder %s17, 1
      %p119 = scmp.ne.s32.totalorder %s114, %s116
      %p120 = scmp.eq.s32.totalorder %s17, 0
      %p121 = por %p119, %p120
      %p122 = scmp.ne.s32.totalorder %s114, %s116
      %p123 = scmp.eq.s32.totalorder %s22, 1
      %p124 = por %p122, %p123
      %p125 = scmp.ne.s32.totalorder %s116, %s117
      %p126 = scmp.eq.s32.totalorder %s22, 0
      %p127 = por %p125, %p126
      %p128 = scmp.ne.s32.totalorder %s116, %s117
      %p129 = scmp.eq.s32.totalorder %s23, 1
      %p130 = por %p128, %p129
      %p132 = scmp.ne.s32.totalorder %s117, %s131
      %p133 = scmp.eq.s32.totalorder %s23, 0
      %p134 = por %p132, %p133
      %s136 = sadd.s32 %s135, 1
      %p139 = scmp.eq.s32.totalorder %s17, 1
      %p140 = scmp.ne.s32.totalorder %s135, %s137
      %p141 = scmp.eq.s32.totalorder %s17, 0
      %p142 = por %p140, %p141
      %p143 = scmp.ne.s32.totalorder %s135, %s137
      %p144 = scmp.eq.s32.totalorder %s22, 1
      %p145 = por %p143, %p144
      %p146 = scmp.ne.s32.totalorder %s137, %s138
      %p147 = scmp.eq.s32.totalorder %s22, 0
      %p148 = por %p146, %p147
      %p149 = scmp.ne.s32.totalorder %s137, %s138
      %p150 = scmp.eq.s32.totalorder %s23, 1
      %p151 = por %p149, %p150
      %p153 = scmp.ne.s32.totalorder %s138, %s152
      %p154 = scmp.eq.s32.totalorder %s23, 0
      %p155 = por %p153, %p154
      %s156 = ssub.s32 %s17, %s24
      %p157 = scmp.eq.s32.totalorder %s156, 0
      %s159 = sadd.s32 %s158, 1
      %s160 = scalar_select %p157, %s158, %s159
      %p163 = pneg %p157
      %p164 = scmp.eq.s32.totalorder %s17, 1
      %p165 = por %p163, %p164
      %p166 = scmp.ne.s32.totalorder %s158, %s161
      %p167 = scmp.eq.s32.totalorder %s17, 0
      %p168 = por %p166, %p167
      %p169 = scmp.ne.s32.totalorder %s158, %s161
      %p170 = scmp.eq.s32.totalorder %s22, 1
      %p171 = por %p169, %p170
      %p172 = scmp.ne.s32.totalorder %s161, %s162
      %p173 = scmp.eq.s32.totalorder %s22, 0
      %p174 = por %p172, %p173
      %p175 = scmp.ne.s32.totalorder %s161, %s162
      %p176 = scmp.eq.s32.totalorder %s23, 1
      %p177 = por %p175, %p176
      %p179 = scmp.ne.s32.totalorder %s162, %s178
      %p180 = scmp.eq.s32.totalorder %s23, 0
      %p181 = por %p179, %p180
      %p182 = scmp.le.s32.totalorder 1, %s17
      %p183 = scmp.lt.s32.totalorder %s17, 3
      %p184 = pnand %p182, %p183
      %p185 = pneg %p184
      // Predicated region
      $region9: #{prenorm_mlp_forward.1} parent=5 // pred_check
        _
      $region10: #{prenorm_mlp_forward.1} parent=5 // pred_check_branch
        %187 = sbr.rel (%p184) target = $region12
      $region11: #{prenorm_mlp_forward.1} parent=5 // pred_region
        %s188 = ssub.s32 %s17, 1
        // Predicated region
        $region13: #{prenorm_mlp_forward.1} parent=11 // pred_check
          %p189 = pneg %p64
        $region14: #{prenorm_mlp_forward.1} parent=11 // pred_check_branch
          %191 = sbr.rel (%p189) target = $region16
        $region15: #{prenorm_mlp_forward.1} parent=11 // pred_region
          _
        $region16: #{prenorm_mlp_forward.1} parent=11 // pred_fallthru
          _
        // Predicated region
        $region17: #{prenorm_mlp_forward.1} parent=11 // pred_check
          %p192 = pneg %p85
        $region18: #{prenorm_mlp_forward.1} parent=11 // pred_check_branch
          %194 = sbr.rel (%p192) target = $region20
        $region19: #{prenorm_mlp_forward.1} parent=11 // pred_region
          %s196 = ssub.s32 3072, 3072
          %197 = vsyncadd [#allocation3], %s196
          %s198 = sshll.u32 [#allocation2], 4
          %s199 = int_to_ptr.vmem [resolvable:$true] %s198
          %204 = dma.hbm_to_vmem [thread:$0]  %s2, 3072, %s199, [#allocation3], 64, 64, 4
        $region20: #{prenorm_mlp_forward.1} parent=11 // pred_fallthru
          _
        // Predicated region
        $region21: #{prenorm_mlp_forward.1} parent=11 // pred_check
          %p205 = pneg %p106
        $region22: #{prenorm_mlp_forward.1} parent=11 // pred_check_branch
          %207 = sbr.rel (%p205) target = $region24
        $region23: #{prenorm_mlp_forward.1} parent=11 // pred_region
          _
        $region24: #{prenorm_mlp_forward.1} parent=11 // pred_fallthru
          _
        // Predicated region
        $region25: #{prenorm_mlp_forward.1} parent=11 // pred_check
          %p208 = pneg %p127
        $region26: #{prenorm_mlp_forward.1} parent=11 // pred_check_branch
          %210 = sbr.rel (%p208) target = $region28
        $region27: #{prenorm_mlp_forward.1} parent=11 // pred_region
          %s212 = ssub.s32 256, 256
          %213 = vsyncadd [#allocation6], %s212
          %s214 = sshll.u32 [#allocation5], 4
          %s215 = int_to_ptr.vmem [resolvable:$true] %s214
          %220 = dma.hbm_to_vmem [thread:$0]  %s4, 256, %s215, [#allocation6], 128, 128, 8
        $region28: #{prenorm_mlp_forward.1} parent=11 // pred_fallthru
          _
        // Predicated region
        $region29: #{prenorm_mlp_forward.1} parent=11 // pred_check
          %p221 = pneg %p148
        $region30: #{prenorm_mlp_forward.1} parent=11 // pred_check_branch
          %223 = sbr.rel (%p221) target = $region32
        $region31: #{prenorm_mlp_forward.1} parent=11 // pred_region
          %s225 = ssub.s32 16, 16
          %226 = vsyncadd [#allocation6], %s225
          %s228 = sshll.u32 [#allocation7], 4
          %s229 = int_to_ptr.vmem [resolvable:$true] %s228
          %231 = dma.hbm_to_vmem [thread:$0]  %s5, 16, %s229, [#allocation6]
        $region32: #{prenorm_mlp_forward.1} parent=11 // pred_fallthru
          _
      $region12: #{prenorm_mlp_forward.1} parent=5 // pred_fallthru
        _
      %p232 = scmp.lt.s32.totalorder %s17, 2
      // Predicated region
      $region33: #{prenorm_mlp_forward.1} parent=5 // pred_check
        %p233 = pneg %p232
      $region34: #{prenorm_mlp_forward.1} parent=5 // pred_check_branch
        %235 = sbr.rel (%p233) target = $region36
      $region35: #{prenorm_mlp_forward.1} parent=5 // pred_region
        // Predicated region
        $region37: #{prenorm_mlp_forward.1} parent=35 // pred_check
          %p236 = pneg %p37
        $region38: #{prenorm_mlp_forward.1} parent=35 // pred_check_branch
          %238 = sbr.rel (%p236) target = $region40
        $region39: #{prenorm_mlp_forward.1} parent=35 // pred_region
          %p239 = scmp.lt.s32.totalorder %s17, 1
          %s240 = scalar_select %p239, %s17, 1
          %s241 = smul.addr %s240, 8
          %s242 = scalar_lea.vmem %s0, %s241
        $region40: #{prenorm_mlp_forward.1} parent=35 // pred_fallthru
          _
      $region36: #{prenorm_mlp_forward.1} parent=5 // pred_fallthru
        _
      %p243 = scmp.le.s32.totalorder 1, %s17
      %p244 = scmp.lt.s32.totalorder %s17, 3
      %p245 = pnand %p243, %p244
      %p246 = pneg %p245
      // Predicated region
      $region41: #{prenorm_mlp_forward.1} parent=5 // pred_check
        _
      $region42: #{prenorm_mlp_forward.1} parent=5 // pred_check_branch
        %248 = sbr.rel (%p245) target = $region44
      $region43: #{prenorm_mlp_forward.1} parent=5 // pred_region
        %s249 = ssub.s32 %s17, 1
        // Predicated region
        $region45: #{prenorm_mlp_forward.1} parent=43 // pred_check
          %p250 = pneg %p85
        $region46: #{prenorm_mlp_forward.1} parent=43 // pred_check_branch
          %252 = sbr.rel (%p250) target = $region48
        $region47: #{prenorm_mlp_forward.1} parent=43 // pred_region
          %253 = dma.done [#allocation3], 3072
        $region48: #{prenorm_mlp_forward.1} parent=43 // pred_fallthru
          _
        // Predicated region
        $region49: #{prenorm_mlp_forward.1} parent=43 // pred_check
          %p254 = pneg %p127
        $region50: #{prenorm_mlp_forward.1} parent=43 // pred_check_branch
          %256 = sbr.rel (%p254) target = $region52
        $region51: #{prenorm_mlp_forward.1} parent=43 // pred_region
          %257 = dma.done [#allocation6], 256
        $region52: #{prenorm_mlp_forward.1} parent=43 // pred_fallthru
          _
        // Predicated region
        $region53: #{prenorm_mlp_forward.1} parent=43 // pred_check
          %p258 = pneg %p148
        $region54: #{prenorm_mlp_forward.1} parent=43 // pred_check_branch
          %260 = sbr.rel (%p258) target = $region56
        $region55: #{prenorm_mlp_forward.1} parent=43 // pred_region
          %261 = dma.done [#allocation6], 16
        $region56: #{prenorm_mlp_forward.1} parent=43 // pred_fallthru
          _
        %p262 = scmp.lt.s32.totalorder %s22, 1
        %s263 = scalar_select %p262, %s22, 1
        %s264 = smul.addr %s263, 8
        %s265 = scalar_lea.vmem %s0, %s264
        %p266 = pneg %p43
        %p267 = pneg %p40
        %p268 = pneg %p64
        %p269 = pneg %p61
        %p270 = pneg %p85
        %p271 = pneg %p82
        %p272 = pneg %p106
        %p273 = pneg %p103
        %p274 = pneg %p127
        %p275 = pneg %p124
        %p276 = pneg %p148
        %p277 = pneg %p145
        %p278 = pneg %p174
        %p279 = pneg %p171
        %s280 = sand.u32 %s161, 1
        %s281 = scalar_lea.sflag [#allocation4], %s280
        %s282 = sand.u32 %s161, 1
        %s283 = smul.addr %s282, 8
        %s284 = scalar_lea.vmem [#allocation8], %s283
        %p285 = scmp.lt.s32.totalorder %s22, 1
        %s286 = scalar_select %p285, %s22, 1
        %s287 = smul.addr %s286, 8
        %s288 = scalar_lea.vmem %s0, %s287
        %v290 = vlaneseq
        %v291 = vand.u32 %v290, 127
        %vm292 = vcmp.lt.s32.totalorder %v291, 32
        %v293 = vld [vmem:[#allocation5] sm:$0xff]
        %v294 = vld [vmem:[#allocation5 + $0x8] sm:$0xf]
        %v295 = vld [vmem:[%s288] sm:$0xff]
        %v296 = vpack.c.bf16 %v295, %v295
        %v297 = vld [vmem:[%s1] sm:$0xf]
        %v298 = vld [vmem:[%s1 + $0x4] sm:$0xf]
        %v299 = vld [vmem:[%s1 + $0x8] sm:$0xf]
        %v300 = vld [vmem:[%s1 + $0xc] sm:$0xf]
        %v301 = vld [vmem:[%s1 + $0x10] sm:$0xf]
        %v302 = vld [vmem:[%s1 + $0x14] sm:$0xf]
        %v303 = vld [vmem:[%s1 + $0x18] sm:$0xf]
        %v304 = vld [vmem:[%s1 + $0x1c] sm:$0xf]
        %v305 = vld [vmem:[%s1 + $0x20] sm:$0xf]
        %v306 = vld [vmem:[%s1 + $0x24] sm:$0xf]
        %v307 = vld [vmem:[%s1 + $0x28] sm:$0xf]
        %v308 = vld [vmem:[%s1 + $0x2c] sm:$0xf]
        %v309 = vld [vmem:[%s1 + $0x30] sm:$0xf]
        %v310 = vld [vmem:[%s1 + $0x34] sm:$0xf]
        %v311 = vld [vmem:[%s1 + $0x38] sm:$0xf]
        %v312 = vld [vmem:[%s1 + $0x3c] sm:$0xf]
        %v313 = vlaneseq
        %v314 = vshrl.u32 %v313, 7
        %v315 = vsub.s32 0, %v314
        %v316 = vrot.slane %v293, %v315
        %v333 = vunpack.c.l.b16 %v297
        %v334 = vunpack.c.l.b16 %v298
        %v335 = vunpack.c.l.b16 %v299
        %v336 = vunpack.c.l.b16 %v300
        %v337 = vunpack.c.l.b16 %v301
        %v338 = vunpack.c.l.b16 %v302
        %v339 = vunpack.c.l.b16 %v303
        %v340 = vunpack.c.l.b16 %v304
        %v341 = vunpack.c.l.b16 %v305
        %v342 = vunpack.c.l.b16 %v306
        %v343 = vunpack.c.l.b16 %v307
        %v344 = vunpack.c.l.b16 %v308
        %v345 = vunpack.c.l.b16 %v309
        %v346 = vunpack.c.l.b16 %v310
        %v347 = vunpack.c.l.b16 %v311
        %v348 = vunpack.c.l.b16 %v312
        %v349 = vpack.c.b16 %v334, %v333
        %v350 = vpack.c.b16 %v336, %v335
        %v351 = vpack.c.b16 %v338, %v337
        %v352 = vpack.c.b16 %v340, %v339
        %v353 = vpack.c.b16 %v342, %v341
        %v354 = vpack.c.b16 %v344, %v343
        %v355 = vpack.c.b16 %v346, %v345
        %v356 = vpack.c.b16 %v348, %v347
        %365 = vmatprep.subr.bf16.mxu0 0
        %366 = vmatpush1.bf16.msra.mxu0 %v349
        %367 = vmatprep.subr.bf16.mxu0 0
        %368 = vmatpush1.bf16.msra.mxu0 %v350
        %369 = vmatprep.subr.bf16.mxu0 0
        %370 = vmatpush1.bf16.msra.mxu0 %v351
        %371 = vmatprep.subr.bf16.mxu0 0
        %372 = vmatpush1.bf16.msra.mxu0 %v352
        %373 = vmatprep.subr.bf16.mxu0 0
        %374 = vmatpush1.bf16.msra.mxu0 %v353
        %375 = vmatprep.subr.bf16.mxu0 0
        %376 = vmatpush1.bf16.msra.mxu0 %v354
        %377 = vmatprep.subr.bf16.mxu0 0
        %378 = vmatpush1.bf16.msra.mxu0 %v355
        %379 = vmatprep.subr.bf16.mxu0 0
        %380 = vmatpush1.bf16.msra.mxu0 %v356
        %381 = vmatprep.subr.bf16.mxu0 0
        %382 = vmatpush1.bf16.msra.mxu0 0
        %383 = vmatprep.subr.bf16.mxu0 0
        %384 = vmatpush1.bf16.msra.mxu0 0
        %385 = vmatprep.subr.bf16.mxu0 0
        %386 = vmatpush1.bf16.msra.mxu0 0
        %387 = vmatprep.subr.bf16.mxu0 0
        %388 = vmatpush1.bf16.msra.mxu0 0
        %389 = vmatprep.subr.bf16.mxu0 0
        %390 = vmatpush1.bf16.msra.mxu0 0
        %391 = vmatprep.subr.bf16.mxu0 0
        %392 = vmatpush1.bf16.msra.mxu0 0
        %393 = vmatprep.subr.bf16.mxu0 0
        %394 = vmatpush1.bf16.msra.mxu0 0
        %395 = vmatprep.subr.bf16.mxu0 0
        %396 = vmatpush1.bf16.msra.mxu0 0
        %397 = vmatprep.mubr.bf16.mxu0 0
        %398 = vmatmul.mubr.bf16.gmra.mrb[0].mxu0 %v296
        %v399 = vpop.f32.mrb[0].mxu0
        %v400 = vadd.f32 %v316, %v399
        %v401 = vpop.f32.mrb[0].mxu0
        %v402 = vpop.f32.mrb[0].mxu0
        %v403 = vpop.f32.mrb[0].mxu0
        %404 = vdwg.mxu0
        %v405 = vmax.f32 %v400, 0.0
        %406 = vadd.xlane.f32.xlu0 %v405
        %v407 = vpop.xlane.xlu0 %406
        %v408 = vmul.f32 %v407, 0.03125
        %v409 = vsub.f32 %v405, %v408
        %v410 = vsel %vm292, 1, 0
        %vm411 = vcmp.eq.s32.totalorder %v410, 1
        %v412 = vsel %vm411, %v409, 0.0
        %v413 = vmul.f32 %v412, %v412
        %414 = vadd.xlane.f32.xlu0 %v413
        %v415 = vpop.xlane.xlu0 %414
        %v416 = vmul.f32 %v415, 0.03125
        %v417 = vadd.f32 %v416, 1e-05
        %v418 = vrsqrt.pop %v417
        %v419 = vmul.f32 %v412, %v418
        %v420 = vlaneseq
        %v421 = vshrl.u32 %v420, 7
        %v422 = vsub.s32 4, %v421
        %v423 = vrot.slane %v293, %v422
        %v424 = vmul.f32 %v419, %v423
        %v425 = vlaneseq
        %v426 = vshrl.u32 %v425, 7
        %v427 = vsub.s32 0, %v426
        %v428 = vrot.slane %v294, %v427
        %v429 = vadd.f32 %v424, %v428
        %v430 = vpack.c.bf16 %v429, %v429
        %v431 = vld [vmem:[#allocation2] sm:$0xf]
        %v432 = vld [vmem:[#allocation2 + $0x4] sm:$0xf]
        %v433 = vld [vmem:[#allocation2 + $0x8] sm:$0xf]
        %v434 = vld [vmem:[#allocation2 + $0xc] sm:$0xf]
        %v435 = vld [vmem:[#allocation2 + $0x10] sm:$0xf]
        %v436 = vld [vmem:[#allocation2 + $0x14] sm:$0xf]
        %v437 = vld [vmem:[#allocation2 + $0x18] sm:$0xf]
        %v438 = vld [vmem:[#allocation2 + $0x1c] sm:$0xf]
        %v439 = vld [vmem:[#allocation2 + $0x20] sm:$0xf]
        %v440 = vld [vmem:[#allocation2 + $0x24] sm:$0xf]
        %v441 = vld [vmem:[#allocation2 + $0x28] sm:$0xf]
        %v442 = vld [vmem:[#allocation2 + $0x2c] sm:$0xf]
        %v443 = vld [vmem:[#allocation2 + $0x30] sm:$0xf]
        %v444 = vld [vmem:[#allocation2 + $0x34] sm:$0xf]
        %v445 = vld [vmem:[#allocation2 + $0x38] sm:$0xf]
        %v446 = vld [vmem:[#allocation2 + $0x3c] sm:$0xf]
        %v447 = vlaneseq
        %v448 = vshrl.u32 %v447, 7
        %v449 = vsub.s32 1, %v448
        %v450 = vrot.slane %v293, %v449
        %v467 = vunpack.c.l.b16 %v431
        %v468 = vunpack.c.l.b16 %v432
        %v469 = vunpack.c.l.b16 %v433
        %v470 = vunpack.c.l.b16 %v434
        %v471 = vunpack.c.l.b16 %v435
        %v472 = vunpack.c.l.b16 %v436
        %v473 = vunpack.c.l.b16 %v437
        %v474 = vunpack.c.l.b16 %v438
        %v475 = vunpack.c.l.b16 %v439
        %v476 = vunpack.c.l.b16 %v440
        %v477 = vunpack.c.l.b16 %v441
        %v478 = vunpack.c.l.b16 %v442
        %v479 = vunpack.c.l.b16 %v443
        %v480 = vunpack.c.l.b16 %v444
        %v481 = vunpack.c.l.b16 %v445
        %v482 = vunpack.c.l.b16 %v446
        %v483 = vpack.c.b16 %v468, %v467
        %v484 = vpack.c.b16 %v470, %v469
        %v485 = vpack.c.b16 %v472, %v471
        %v486 = vpack.c.b16 %v474, %v473
        %v487 = vpack.c.b16 %v476, %v475
        %v488 = vpack.c.b16 %v478, %v477
        %v489 = vpack.c.b16 %v480, %v479
        %v490 = vpack.c.b16 %v482, %v481
        %499 = vmatprep.subr.bf16.mxu0 0
        %500 = vmatpush1.bf16.msra.mxu0 %v483
        %501 = vmatprep.subr.bf16.mxu0 0
        %502 = vmatpush1.bf16.msra.mxu0 %v484
        %503 = vmatprep.subr.bf16.mxu0 0
        %504 = vmatpush1.bf16.msra.mxu0 %v485
        %505 = vmatprep.subr.bf16.mxu0 0
        %506 = vmatpush1.bf16.msra.mxu0 %v486
        %507 = vmatprep.subr.bf16.mxu0 0
        %508 = vmatpush1.bf16.msra.mxu0 %v487
        %509 = vmatprep.subr.bf16.mxu0 0
        %510 = vmatpush1.bf16.msra.mxu0 %v488
        %511 = vmatprep.subr.bf16.mxu0 0
        %512 = vmatpush1.bf16.msra.mxu0 %v489
        %513 = vmatprep.subr.bf16.mxu0 0
        %514 = vmatpush1.bf16.msra.mxu0 %v490
        %515 = vmatprep.subr.bf16.mxu0 0
        %516 = vmatpush1.bf16.msra.mxu0 0
        %517 = vmatprep.subr.bf16.mxu0 0
        %518 = vmatpush1.bf16.msra.mxu0 0
        %519 = vmatprep.subr.bf16.mxu0 0
        %520 = vmatpush1.bf16.msra.mxu0 0
        %521 = vmatprep.subr.bf16.mxu0 0
        %522 = vmatpush1.bf16.msra.mxu0 0
        %523 = vmatprep.subr.bf16.mxu0 0
        %524 = vmatpush1.bf16.msra.mxu0 0
        %525 = vmatprep.subr.bf16.mxu0 0
        %526 = vmatpush1.bf16.msra.mxu0 0
        %527 = vmatprep.subr.bf16.mxu0 0
        %528 = vmatpush1.bf16.msra.mxu0 0
        %529 = vmatprep.subr.bf16.mxu0 0
        %530 = vmatpush1.bf16.msra.mxu0 0
        %531 = vmatprep.mubr.bf16.mxu0 0
        %532 = vmatmul.mubr.bf16.gmra.mrb[0].mxu0 %v430
        %v533 = vpop.f32.mrb[0].mxu0
        %v534 = vadd.f32 %v450, %v533
        %v535 = vpop.f32.mrb[0].mxu0
        %v536 = vpop.f32.mrb[0].mxu0
        %v537 = vpop.f32.mrb[0].mxu0
        %538 = vdwg.mxu0
        %v539 = vmax.f32 %v534, 0.0
        %540 = vadd.xlane.f32.xlu0 %v539
        %v541 = vpop.xlane.xlu0 %540
        %v542 = vmul.f32 %v541, 0.03125
        %v543 = vsub.f32 %v539, %v542
        %v544 = vsel %vm411, %v543, 0.0
        %v545 = vmul.f32 %v544, %v544
        %546 = vadd.xlane.f32.xlu0 %v545
        %v547 = vpop.xlane.xlu0 %546
        %v548 = vmul.f32 %v547, 0.03125
        %v549 = vadd.f32 %v548, 1e-05
        %v550 = vrsqrt.pop %v549
        %v551 = vmul.f32 %v544, %v550
        %v552 = vlaneseq
        %v553 = vshrl.u32 %v552, 7
        %v554 = vsub.s32 5, %v553
        %v555 = vrot.slane %v293, %v554
        %v556 = vmul.f32 %v551, %v555
        %v557 = vlaneseq
        %v558 = vshrl.u32 %v557, 7
        %v559 = vsub.s32 1, %v558
        %v560 = vrot.slane %v294, %v559
        %v561 = vadd.f32 %v556, %v560
        %v562 = vpack.c.bf16 %v561, %v561
        %s563 = scalar_lea.vmem [#allocation2], 64
        %v564 = vld [vmem:[%s563] sm:$0xf]
        %v565 = vld [vmem:[%s563 + $0x4] sm:$0xf]
        %v566 = vld [vmem:[%s563 + $0x8] sm:$0xf]
        %v567 = vld [vmem:[%s563 + $0xc] sm:$0xf]
        %v568 = vld [vmem:[%s563 + $0x10] sm:$0xf]
        %v569 = vld [vmem:[%s563 + $0x14] sm:$0xf]
        %v570 = vld [vmem:[%s563 + $0x18] sm:$0xf]
        %v571 = vld [vmem:[%s563 + $0x1c] sm:$0xf]
        %v572 = vld [vmem:[%s563 + $0x20] sm:$0xf]
        %v573 = vld [vmem:[%s563 + $0x24] sm:$0xf]
        %v574 = vld [vmem:[%s563 + $0x28] sm:$0xf]
        %v575 = vld [vmem:[%s563 + $0x2c] sm:$0xf]
        %v576 = vld [vmem:[%s563 + $0x30] sm:$0xf]
        %v577 = vld [vmem:[%s563 + $0x34] sm:$0xf]
        %v578 = vld [vmem:[%s563 + $0x38] sm:$0xf]
        %v579 = vld [vmem:[%s563 + $0x3c] sm:$0xf]
        %v580 = vlaneseq
        %v581 = vshrl.u32 %v580, 7
        %v582 = vsub.s32 2, %v581
        %v583 = vrot.slane %v293, %v582
        %v600 = vunpack.c.l.b16 %v564
        %v601 = vunpack.c.l.b16 %v565
        %v602 = vunpack.c.l.b16 %v566
        %v603 = vunpack.c.l.b16 %v567
        %v604 = vunpack.c.l.b16 %v568
        %v605 = vunpack.c.l.b16 %v569
        %v606 = vunpack.c.l.b16 %v570
        %v607 = vunpack.c.l.b16 %v571
        %v608 = vunpack.c.l.b16 %v572
        %v609 = vunpack.c.l.b16 %v573
        %v610 = vunpack.c.l.b16 %v574
        %v611 = vunpack.c.l.b16 %v575
        %v612 = vunpack.c.l.b16 %v576
        %v613 = vunpack.c.l.b16 %v577
        %v614 = vunpack.c.l.b16 %v578
        %v615 = vunpack.c.l.b16 %v579
        %v616 = vpack.c.b16 %v601, %v600
        %v617 = vpack.c.b16 %v603, %v602
        %v618 = vpack.c.b16 %v605, %v604
        %v619 = vpack.c.b16 %v607, %v606
        %v620 = vpack.c.b16 %v609, %v608
        %v621 = vpack.c.b16 %v611, %v610
        %v622 = vpack.c.b16 %v613, %v612
        %v623 = vpack.c.b16 %v615, %v614
        %632 = vmatprep.subr.bf16.mxu0 0
        %633 = vmatpush1.bf16.msra.mxu0 %v616
        %634 = vmatprep.subr.bf16.mxu0 0
        %635 = vmatpush1.bf16.msra.mxu0 %v617
        %636 = vmatprep.subr.bf16.mxu0 0
        %637 = vmatpush1.bf16.msra.mxu0 %v618
        %638 = vmatprep.subr.bf16.mxu0 0
        %639 = vmatpush1.bf16.msra.mxu0 %v619
        %640 = vmatprep.subr.bf16.mxu0 0
        %641 = vmatpush1.bf16.msra.mxu0 %v620
        %642 = vmatprep.subr.bf16.mxu0 0
        %643 = vmatpush1.bf16.msra.mxu0 %v621
        %644 = vmatprep.subr.bf16.mxu0 0
        %645 = vmatpush1.bf16.msra.mxu0 %v622
        %646 = vmatprep.subr.bf16.mxu0 0
        %647 = vmatpush1.bf16.msra.mxu0 %v623
        %648 = vmatprep.subr.bf16.mxu0 0
        %649 = vmatpush1.bf16.msra.mxu0 0
        %650 = vmatprep.subr.bf16.mxu0 0
        %651 = vmatpush1.bf16.msra.mxu0 0
        %652 = vmatprep.subr.bf16.mxu0 0
        %653 = vmatpush1.bf16.msra.mxu0 0
        %654 = vmatprep.subr.bf16.mxu0 0
        %655 = vmatpush1.bf16.msra.mxu0 0
        %656 = vmatprep.subr.bf16.mxu0 0
        %657 = vmatpush1.bf16.msra.mxu0 0
        %658 = vmatprep.subr.bf16.mxu0 0
        %659 = vmatpush1.bf16.msra.mxu0 0
        %660 = vmatprep.subr.bf16.mxu0 0
        %661 = vmatpush1.bf16.msra.mxu0 0
        %662 = vmatprep.subr.bf16.mxu0 0
        %663 = vmatpush1.bf16.msra.mxu0 0
        %664 = vmatprep.mubr.bf16.mxu0 0
        %665 = vmatmul.mubr.bf16.gmra.mrb[0].mxu0 %v562
        %v666 = vpop.f32.mrb[0].mxu0
        %v667 = vadd.f32 %v583, %v666
        %v668 = vpop.f32.mrb[0].mxu0
        %v669 = vpop.f32.mrb[0].mxu0
        %v670 = vpop.f32.mrb[0].mxu0
        %671 = vdwg.mxu0
        %v672 = vmax.f32 %v667, 0.0
        %673 = vadd.xlane.f32.xlu0 %v672
        %v674 = vpop.xlane.xlu0 %673
        %v675 = vmul.f32 %v674, 0.03125
        %v676 = vsub.f32 %v672, %v675
        %v677 = vsel %vm411, %v676, 0.0
        %v678 = vmul.f32 %v677, %v677
        %679 = vadd.xlane.f32.xlu0 %v678
        %v680 = vpop.xlane.xlu0 %679
        %v681 = vmul.f32 %v680, 0.03125
        %v682 = vadd.f32 %v681, 1e-05
        %v683 = vrsqrt.pop %v682
        %v684 = vmul.f32 %v677, %v683
        %v685 = vlaneseq
        %v686 = vshrl.u32 %v685, 7
        %v687 = vsub.s32 6, %v686
        %v688 = vrot.slane %v293, %v687
        %v689 = vmul.f32 %v684, %v688
        %v690 = vlaneseq
        %v691 = vshrl.u32 %v690, 7
        %v692 = vsub.s32 2, %v691
        %v693 = vrot.slane %v294, %v692
        %v694 = vadd.f32 %v689, %v693
        %v695 = vpack.c.bf16 %v694, %v694
        %s696 = scalar_lea.vmem [#allocation2], 128
        %v697 = vld [vmem:[%s696] sm:$0xf]
        %v698 = vld [vmem:[%s696 + $0x4] sm:$0xf]
        %v699 = vld [vmem:[%s696 + $0x8] sm:$0xf]
        %v700 = vld [vmem:[%s696 + $0xc] sm:$0xf]
        %v701 = vld [vmem:[%s696 + $0x10] sm:$0xf]
        %v702 = vld [vmem:[%s696 + $0x14] sm:$0xf]
        %v703 = vld [vmem:[%s696 + $0x18] sm:$0xf]
        %v704 = vld [vmem:[%s696 + $0x1c] sm:$0xf]
        %v705 = vld [vmem:[%s696 + $0x20] sm:$0xf]
        %v706 = vld [vmem:[%s696 + $0x24] sm:$0xf]
        %v707 = vld [vmem:[%s696 + $0x28] sm:$0xf]
        %v708 = vld [vmem:[%s696 + $0x2c] sm:$0xf]
        %v709 = vld [vmem:[%s696 + $0x30] sm:$0xf]
        %v710 = vld [vmem:[%s696 + $0x34] sm:$0xf]
        %v711 = vld [vmem:[%s696 + $0x38] sm:$0xf]
        %v712 = vld [vmem:[%s696 + $0x3c] sm:$0xf]
        %v713 = vlaneseq
        %v714 = vshrl.u32 %v713, 7
        %v715 = vsub.s32 3, %v714
        %v716 = vrot.slane %v293, %v715
        %v733 = vunpack.c.l.b16 %v697
        %v734 = vunpack.c.l.b16 %v698
        %v735 = vunpack.c.l.b16 %v699
        %v736 = vunpack.c.l.b16 %v700
        %v737 = vunpack.c.l.b16 %v701
        %v738 = vunpack.c.l.b16 %v702
        %v739 = vunpack.c.l.b16 %v703
        %v740 = vunpack.c.l.b16 %v704
        %v741 = vunpack.c.l.b16 %v705
        %v742 = vunpack.c.l.b16 %v706
        %v743 = vunpack.c.l.b16 %v707
        %v744 = vunpack.c.l.b16 %v708
        %v745 = vunpack.c.l.b16 %v709
        %v746 = vunpack.c.l.b16 %v710
        %v747 = vunpack.c.l.b16 %v711
        %v748 = vunpack.c.l.b16 %v712
        %v749 = vpack.c.b16 %v734, %v733
        %v750 = vpack.c.b16 %v736, %v735
        %v751 = vpack.c.b16 %v738, %v737
        %v752 = vpack.c.b16 %v740, %v739
        %v753 = vpack.c.b16 %v742, %v741
        %v754 = vpack.c.b16 %v744, %v743
        %v755 = vpack.c.b16 %v746, %v745
        %v756 = vpack.c.b16 %v748, %v747
        %765 = vmatprep.subr.bf16.mxu0 0
        %766 = vmatpush1.bf16.msra.mxu0 %v749
        %767 = vmatprep.subr.bf16.mxu0 0
        %768 = vmatpush1.bf16.msra.mxu0 %v750
        %769 = vmatprep.subr.bf16.mxu0 0
        %770 = vmatpush1.bf16.msra.mxu0 %v751
        %771 = vmatprep.subr.bf16.mxu0 0
        %772 = vmatpush1.bf16.msra.mxu0 %v752
        %773 = vmatprep.subr.bf16.mxu0 0
        %774 = vmatpush1.bf16.msra.mxu0 %v753
        %775 = vmatprep.subr.bf16.mxu0 0
        %776 = vmatpush1.bf16.msra.mxu0 %v754
        %777 = vmatprep.subr.bf16.mxu0 0
        %778 = vmatpush1.bf16.msra.mxu0 %v755
        %779 = vmatprep.subr.bf16.mxu0 0
        %780 = vmatpush1.bf16.msra.mxu0 %v756
        %781 = vmatprep.subr.bf16.mxu0 0
        %782 = vmatpush1.bf16.msra.mxu0 0
        %783 = vmatprep.subr.bf16.mxu0 0
        %784 = vmatpush1.bf16.msra.mxu0 0
        %785 = vmatprep.subr.bf16.mxu0 0
        %786 = vmatpush1.bf16.msra.mxu0 0
        %787 = vmatprep.subr.bf16.mxu0 0
        %788 = vmatpush1.bf16.msra.mxu0 0
        %789 = vmatprep.subr.bf16.mxu0 0
        %790 = vmatpush1.bf16.msra.mxu0 0
        %791 = vmatprep.subr.bf16.mxu0 0
        %792 = vmatpush1.bf16.msra.mxu0 0
        %793 = vmatprep.subr.bf16.mxu0 0
        %794 = vmatpush1.bf16.msra.mxu0 0
        %795 = vmatprep.subr.bf16.mxu0 0
        %796 = vmatpush1.bf16.msra.mxu0 0
        %797 = vmatprep.mubr.bf16.mxu0 0
        %798 = vmatmul.mubr.bf16.gmra.mrb[0].mxu0 %v695
        %v799 = vpop.f32.mrb[0].mxu0
        %v800 = vadd.f32 %v716, %v799
        %v801 = vpop.f32.mrb[0].mxu0
        %v802 = vpop.f32.mrb[0].mxu0
        %v803 = vpop.f32.mrb[0].mxu0
        %804 = vdwg.mxu0
        %v805 = vmax.f32 %v800, 0.0
        %806 = vadd.xlane.f32.xlu0 %v805
        %v807 = vpop.xlane.xlu0 %806
        %v808 = vmul.f32 %v807, 0.03125
        %v809 = vsub.f32 %v805, %v808
        %v810 = vsel %vm411, %v809, 0.0
        %v811 = vmul.f32 %v810, %v810
        %812 = vadd.xlane.f32.xlu0 %v811
        %v813 = vpop.xlane.xlu0 %812
        %v814 = vmul.f32 %v813, 0.03125
        %v815 = vadd.f32 %v814, 1e-05
        %v816 = vrsqrt.pop %v815
        %v817 = vmul.f32 %v810, %v816
        %v818 = vlaneseq
        %v819 = vshrl.u32 %v818, 7
        %v820 = vsub.s32 7, %v819
        %v821 = vrot.slane %v293, %v820
        %v822 = vmul.f32 %v817, %v821
        %v823 = vlaneseq
        %v824 = vshrl.u32 %v823, 7
        %v825 = vsub.s32 3, %v824
        %v826 = vrot.slane %v294, %v825
        %v827 = vadd.f32 %v822, %v826
        %v828 = vpack.c.bf16 %v827, %v827
        %v829 = vld [vmem:[%s3] sm:$0xf]
        %v830 = vld [vmem:[%s3 + $0x4] sm:$0xf]
        %v831 = vld [vmem:[%s3 + $0x8] sm:$0xf]
        %v832 = vld [vmem:[%s3 + $0xc] sm:$0xf]
        %v833 = vld [vmem:[%s3 + $0x10] sm:$0xf]
        %v834 = vld [vmem:[%s3 + $0x14] sm:$0xf]
        %v835 = vld [vmem:[%s3 + $0x18] sm:$0xf]
        %v836 = vld [vmem:[%s3 + $0x1c] sm:$0xf]
        %v837 = vld [vmem:[%s3 + $0x20] sm:$0xf]
        %v838 = vld [vmem:[%s3 + $0x24] sm:$0xf]
        %v839 = vld [vmem:[%s3 + $0x28] sm:$0xf]
        %v840 = vld [vmem:[%s3 + $0x2c] sm:$0xf]
        %v841 = vld [vmem:[%s3 + $0x30] sm:$0xf]
        %v842 = vld [vmem:[%s3 + $0x34] sm:$0xf]
        %v843 = vld [vmem:[%s3 + $0x38] sm:$0xf]
        %v844 = vld [vmem:[%s3 + $0x3c] sm:$0xf]
        %v845 = vld [vmem:[#allocation7] sm:$0x1]
        %v847 = vlaneseq
        %v848 = vshrl.u32 %v847, 7
        %v849 = vsub.s32 0, %v848
        %v850 = vrot.slane %v845, %v849
        %v868 = vunpack.c.l.b16 %v829
        %v869 = vunpack.c.l.b16 %v830
        %v870 = vunpack.c.l.b16 %v831
        %v871 = vunpack.c.l.b16 %v832
        %v872 = vunpack.c.l.b16 %v833
        %v873 = vunpack.c.l.b16 %v834
        %v874 = vunpack.c.l.b16 %v835
        %v875 = vunpack.c.l.b16 %v836
        %v876 = vunpack.c.l.b16 %v837
        %v877 = vunpack.c.l.b16 %v838
        %v878 = vunpack.c.l.b16 %v839
        %v879 = vunpack.c.l.b16 %v840
        %v880 = vunpack.c.l.b16 %v841
        %v881 = vunpack.c.l.b16 %v842
        %v882 = vunpack.c.l.b16 %v843
        %v883 = vunpack.c.l.b16 %v844
        %v884 = vpack.c.b16 %v869, %v868
        %v885 = vpack.c.b16 %v871, %v870
        %v886 = vpack.c.b16 %v873, %v872
        %v887 = vpack.c.b16 %v875, %v874
        %v888 = vpack.c.b16 %v877, %v876
        %v889 = vpack.c.b16 %v879, %v878
        %v890 = vpack.c.b16 %v881, %v880
        %v891 = vpack.c.b16 %v883, %v882
        %900 = vmatprep.subr.bf16.mxu0 0
        %901 = vmatpush1.bf16.msra.mxu0 %v884
        %902 = vmatprep.subr.bf16.mxu0 0
        %903 = vmatpush1.bf16.msra.mxu0 %v885
        %904 = vmatprep.subr.bf16.mxu0 0
        %905 = vmatpush1.bf16.msra.mxu0 %v886
        %906 = vmatprep.subr.bf16.mxu0 0
        %907 = vmatpush1.bf16.msra.mxu0 %v887
        %908 = vmatprep.subr.bf16.mxu0 0
        %909 = vmatpush1.bf16.msra.mxu0 %v888
        %910 = vmatprep.subr.bf16.mxu0 0
        %911 = vmatpush1.bf16.msra.mxu0 %v889
        %912 = vmatprep.subr.bf16.mxu0 0
        %913 = vmatpush1.bf16.msra.mxu0 %v890
        %914 = vmatprep.subr.bf16.mxu0 0
        %915 = vmatpush1.bf16.msra.mxu0 %v891
        %916 = vmatprep.subr.bf16.mxu0 0
        %917 = vmatpush1.bf16.msra.mxu0 0
        %918 = vmatprep.subr.bf16.mxu0 0
        %919 = vmatpush1.bf16.msra.mxu0 0
        %920 = vmatprep.subr.bf16.mxu0 0
        %921 = vmatpush1.bf16.msra.mxu0 0
        %922 = vmatprep.subr.bf16.mxu0 0
        %923 = vmatpush1.bf16.msra.mxu0 0
        %924 = vmatprep.subr.bf16.mxu0 0
        %925 = vmatpush1.bf16.msra.mxu0 0
        %926 = vmatprep.subr.bf16.mxu0 0
        %927 = vmatpush1.bf16.msra.mxu0 0
        %928 = vmatprep.subr.bf16.mxu0 0
        %929 = vmatpush1.bf16.msra.mxu0 0
        %930 = vmatprep.subr.bf16.mxu0 0
        %931 = vmatpush1.bf16.msra.mxu0 0
        %932 = vmatprep.mubr.bf16.mxu0 0
        %933 = vmatmul.mubr.bf16.gmra.mrb[0].mxu0 %v828
        %v934 = vpop.f32.mrb[0].mxu0
        %v935 = vadd.f32 %v850, %v934
        %v936 = vpop.f32.mrb[0].mxu0
        %v937 = vpop.f32.mrb[0].mxu0
        %v938 = vpop.f32.mrb[0].mxu0
        %939 = vdwg.mxu0
        %940 = vst [vmem:[%s284] sm:$0xff] %v935
        %s941 = sand.u32 %s161, 1
        %s942 = scalar_lea.sflag [#allocation4], %s941
        %s943 = sand.u32 %s161, 1
        %s944 = smul.addr %s943, 8
        %s945 = scalar_lea.vmem [#allocation8], %s944
        // Predicated region
        $region57: #{prenorm_mlp_forward.1} parent=43 // pred_check
          %p946 = pneg %p171
        $region58: #{prenorm_mlp_forward.1} parent=43 // pred_check_branch
          %948 = sbr.rel (%p946) target = $region60
        $region59: #{prenorm_mlp_forward.1} parent=43 // pred_region
          %s950 = ssub.s32 128, 128
          %951 = vsyncadd %s942, %s950
          %s952 = smul.addr %s22, 128
          %s953 = scalar_lea.hbm %s6, %s952
          %s955 = sshll.u32 %s945, 4
          %s956 = int_to_ptr.vmem [resolvable:$true] %s955
          %958 = dma.vmem_to_hbm [thread:$0]  %s956, 128, %s953, %s942
        $region60: #{prenorm_mlp_forward.1} parent=43 // pred_fallthru
          _
      $region44: #{prenorm_mlp_forward.1} parent=5 // pred_fallthru
        _
      %p959 = scmp.le.s32.totalorder 2, %s17
      // Predicated region
      $region61: #{prenorm_mlp_forward.1} parent=5 // pred_check
        %p960 = pneg %p959
      $region62: #{prenorm_mlp_forward.1} parent=5 // pred_check_branch
        %962 = sbr.rel (%p960) target = $region64
      $region63: #{prenorm_mlp_forward.1} parent=5 // pred_region
        %s963 = ssub.s32 %s17, 2
        // Predicated region
        $region65: #{prenorm_mlp_forward.1} parent=63 // pred_check
          %p964 = pneg %p177
        $region66: #{prenorm_mlp_forward.1} parent=63 // pred_check_branch
          %966 = sbr.rel (%p964) target = $region68
        $region67: #{prenorm_mlp_forward.1} parent=63 // pred_region
          %s967 = sand.u32 %s162, 1
          %s968 = scalar_lea.sflag [#allocation4], %s967
          %s969 = sand.u32 %s162, 1
          %s970 = smul.addr %s969, 8
          %s971 = scalar_lea.vmem [#allocation8], %s970
          %972 = dma.done %s968, 128
        $region68: #{prenorm_mlp_forward.1} parent=63 // pred_fallthru
          _
      $region64: #{prenorm_mlp_forward.1} parent=5 // pred_fallthru
        _
    $region6: #{prenorm_mlp_forward.1} parent=1 // loop_footer
      %s21 = sadd.s32 1, %s17
    $region7: #{prenorm_mlp_forward.1} parent=1 // loop_footer_branch
      %16 = sbr.rel target = $region3
    $region8: #{prenorm_mlp_forward.1} parent=1 // loop_exit
      _
    %973 = vsyncpa [#allocation3], 1
    %s974 = scalar_lea.sflag [#allocation3], 1
    %975 = vsyncpa %s974, 1
    %976 = vsyncpa [#allocation6], 1
    %977 = vsyncpa [#allocation4], 1
    %s978 = scalar_lea.sflag [#allocation4], 1
    %979 = vsyncpa %s978, 1

</llo_original>
